<compile_context>
chip_gen: v7x
topology: tpu7x:2x2x1
jax: 0.10.0
libtpu: 0.0.40
codegen_flags: <defaults>
</compile_context>

<pallas_src>
import jax
import jax.numpy as jnp
from jax.experimental import pallas as pl
from jax.experimental.pallas import tpu as pltpu


def _pad_to(n, m):
    return ((n + m - 1) // m) * m


def _sigmoid(z):
    # 1/(1+exp(-z)) == 0.5*tanh(0.5*z) + 0.5 : one EUP push, no divide.
    half = jnp.asarray(0.5, dtype=z.dtype)
    return half * jnp.tanh(half * z) + half


def make_kernel(tb, cards, n_layers, compute_dtype):
    """Kernel params (all resident in VMEM via constant index_maps):
       [M_0..M_{c-1} (folded emb@W0 rows), W0_cont, b0, W_1, b_1, ..., W_L, b_L]
    """
    n_cat = len(cards)

    def kernel(xcat_ref, xcont_ref, *refs):
        o_ref = refs[-1]
        params = refs[:-1]

        # ---- layer 0: embedding gather folded into the first linear ----
        # z0 = sum_i onehot(x_cat[:, i]) @ (E_i @ W0_i) + x_cont @ W0_cont + b0
        xcat = xcat_ref[...]                                   # (tb, n_cat) i32
        z = jnp.dot(xcont_ref[...], params[n_cat][...],
                    preferred_element_type=jnp.float32)        # (tb, h0) f32
        for i in range(n_cat):
            idx = xcat[:, i:i + 1]                             # (tb, 1)
            iota = jax.lax.broadcasted_iota(jnp.int32, (tb, cards[i]), 1)
            onehot = (idx == iota).astype(compute_dtype)       # (tb, ni)
            z = z + jnp.dot(onehot, params[i][...],
                            preferred_element_type=jnp.float32)
        z = z + params[n_cat + 1][...]                         # b0 (1, h0) f32

        hidden = n_layers > 1
        # Hidden activations in compute dtype (bf16 vregs on v6e/v7x EUP/VPU);
        # nn.Dropout after each hidden sigmoid is identity at inference.
        h = _sigmoid(z.astype(compute_dtype)) if hidden else _sigmoid(z)

        # ---- remaining layers ----
        base = n_cat + 2
        for li in range(1, n_layers):
            w = params[base + 2 * (li - 1)][...]
            b = params[base + 2 * (li - 1) + 1][...]
            z = jnp.dot(h, w, preferred_element_type=jnp.float32) + b
            if li < n_layers - 1:
                h = _sigmoid(z.astype(compute_dtype))
            else:
                h = _sigmoid(z)                                # final sigmoid f32
        o_ref[...] = h.astype(o_ref.dtype)

    return kernel


def tabular_model_sig_forward(x_cat, x_cont, emb_tables, linear_params,
                              compute_dtype=jnp.bfloat16, tb=2048):
    """Forward pass.

    x_cat:  [B, n_cat]  int32 categorical indices
    x_cont: [B, n_cont] float32 continuous features
    emb_tables: list of [ni, nf] float32 embedding matrices
    linear_params: list of (W [in, out], b [1, out]) float32
    """
    B = x_cat.shape[0]
    n_cat = len(emb_tables)
    cards = [int(t.shape[0]) for t in emb_tables]
    nfs = [int(t.shape[1]) for t in emb_tables]
    n_cont = x_cont.shape[1]
    n_layers = len(linear_params)
    hidden_dims = [int(w.shape[1]) for (w, _) in linear_params]
    out_sz = hidden_dims[-1]

    # --- batch tile: big enough to amortize per-step overhead, 16-sublane
    #     multiple (bf16 packing), capped at ceil(B/2) so large batches give
    #     >= 2 grid tiles (lets v7x shard across both TensorCores). ---
    tb = min(tb, _pad_to(-(-B // 2), 16))
    tb = _pad_to(max(tb, 16), 16)
    b_pad = _pad_to(B, tb)
    grid = (b_pad // tb,)

    # --- fold each embedding table into the first linear layer ---
    w0, b0 = linear_params[0]
    folded = []
    row = 0
    for tbl, nf in zip(emb_tables, nfs):
        m = tbl.astype(jnp.float32) @ w0[row:row + nf].astype(jnp.float32)
        folded.append(m.astype(compute_dtype))                 # (ni, h0)
        row += nf
    w0_cont = w0[row:].astype(compute_dtype)                   # (n_cont, h0)
    params = folded + [w0_cont, b0.astype(jnp.float32).reshape(1, -1)]
    for (w, b) in linear_params[1:]:
        params.append(w.astype(compute_dtype))
        params.append(b.astype(jnp.float32).reshape(1, -1))

    # Resident (constant index_map), full-dim blocks.  Total is a few KiB, so
    # default double-buffering costs nothing (pl.Buffered(1) not needed).
    param_specs = [pl.BlockSpec(p.shape, lambda i: (0, 0)) for p in params]

    # --- batch-padded inputs: only the batch dim is padded; feature dims
    #     stay natural (no 128-lane padding shipped through HBM). ---
    xcat_p = jnp.zeros((b_pad, n_cat), dtype=jnp.int32).at[:B].set(
        x_cat.astype(jnp.int32))
    xcont_p = jnp.zeros((b_pad, n_cont), dtype=compute_dtype).at[:B].set(
        x_cont.astype(compute_dtype))

    kernel = make_kernel(tb, cards, n_layers, compute_dtype)

    # Advisory cost estimate from the real (unpadded) layer dims.
    mm_dims = list(zip(cards + [n_cont] + hidden_dims[:-1],
                       [hidden_dims[0]] * (n_cat + 1) + hidden_dims[1:]))
    flops = int(2 * b_pad * sum(k * n for k, n in mm_dims))
    transcendentals = int(b_pad * sum(hidden_dims))
    bytes_accessed = int(
        xcat_p.size * 4
        + xcont_p.size * xcont_p.dtype.itemsize
        + sum(int(p.size) * p.dtype.itemsize for p in params)
        + b_pad * out_sz * jnp.dtype(compute_dtype).itemsize)

    out = pl.pallas_call(
        kernel,
        out_shape=jax.ShapeDtypeStruct((b_pad, out_sz), compute_dtype),
        grid=grid,
        in_specs=[pl.BlockSpec((tb, n_cat), lambda i: (i, 0)),
                  pl.BlockSpec((tb, n_cont), lambda i: (i, 0))] + param_specs,
        out_specs=pl.BlockSpec((tb, out_sz), lambda i: (i, 0)),
        compiler_params=pltpu.CompilerParams(
            dimension_semantics=("parallel",),
            vmem_limit_bytes=32 * 1024 * 1024),
        cost_estimate=pl.CostEstimate(
            flops=flops, transcendentals=transcendentals,
            bytes_accessed=bytes_accessed),
    )(xcat_p, xcont_p, *params)

    return out[:B]   # strip batch padding


def reference_forward(x_cat, x_cont, emb_tables, linear_params):
    embeddings = [tbl[x_cat[:, i]] for i, tbl in enumerate(emb_tables)]
    h = jnp.concatenate(embeddings + [x_cont.astype(jnp.float32)], axis=1)
    for (w, b) in linear_params:
        h = jax.nn.sigmoid(
            jnp.dot(h, w, precision=jax.lax.Precision.HIGHEST) + b)
    return h


if __name__ == "__main__":
    key = jax.random.PRNGKey(0)

    # Model config (small, consistent with the PyTorch __init__):
    emb_szs = [(10, 4), (7, 3)]        # (num_embeddings, embedding_dim)
    n_cont = 5
    layers = [32, 16]
    out_sz = 2
    batch = 8

    n_embs = sum(nf for _, nf in emb_szs)
    n_in = n_embs + n_cont

    keys = jax.random.split(key, 16)
    ki = iter(keys)

    emb_tables = [
        jax.random.normal(next(ki), (ni, nf), dtype=jnp.float32) * 0.1
        for ni, nf in emb_szs
    ]

    linear_params = []
    fan_in = n_in
    for width in layers + [out_sz]:
        w = jax.random.normal(next(ki), (fan_in, width), dtype=jnp.float32) * (
            1.0 / jnp.sqrt(fan_in))
        b = jax.random.normal(next(ki), (1, width), dtype=jnp.float32) * 0.01
        linear_params.append((w, b))
        fan_in = width

    x_cat = jnp.stack(
        [jax.random.randint(next(ki), (batch,), 0, ni, dtype=jnp.int32)
         for ni, _ in emb_szs], axis=1)          # [batch, n_cat]
    x_cont = jax.random.normal(next(ki), (batch, n_cont), dtype=jnp.float32)

    ref = reference_forward(x_cat, x_cont, emb_tables, linear_params)

    # --- bf16 MXU path (f32 accumulation, bf16 hidden act, f32 final act) ---
    out_bf16 = tabular_model_sig_forward(
        x_cat, x_cont, emb_tables, linear_params, compute_dtype=jnp.bfloat16)
    out_bf16 = jax.block_until_ready(out_bf16)
    assert out_bf16.shape == (batch, out_sz)
    assert jnp.allclose(out_bf16.astype(jnp.float32), ref, atol=2e-2, rtol=2e-2)

    # --- f32 path (tolerance allows for multi-pass MXU f32 rounding) ---
    out_f32 = tabular_model_sig_forward(
        x_cat, x_cont, emb_tables, linear_params, compute_dtype=jnp.float32)
    out_f32 = jax.block_until_ready(out_f32)
    assert out_f32.shape == (batch, out_sz)
    assert jnp.allclose(out_f32, ref, atol=2e-3, rtol=2e-3)

    print("KERNEL_OK")
</pallas_src>

<mosaic_0001>
module attributes {stable_mosaic.version = 11 : i64} {
  func.func @kernel(%arg0: i32, %arg1: memref<16x2xi32, #tpu.memory_space<vmem>>, %arg2: memref<16x5xbf16, #tpu.memory_space<vmem>>, %arg3: memref<10x32xbf16, #tpu.memory_space<vmem>>, %arg4: memref<7x32xbf16, #tpu.memory_space<vmem>>, %arg5: memref<5x32xbf16, #tpu.memory_space<vmem>>, %arg6: memref<1x32xf32, #tpu.memory_space<vmem>>, %arg7: memref<32x16xbf16, #tpu.memory_space<vmem>>, %arg8: memref<1x16xf32, #tpu.memory_space<vmem>>, %arg9: memref<16x2xbf16, #tpu.memory_space<vmem>>, %arg10: memref<1x2xf32, #tpu.memory_space<vmem>>, %arg11: memref<16x2xbf16, #tpu.memory_space<vmem>>) attributes {dimension_semantics = [#tpu.dimension_semantics<parallel>], iteration_bounds = array<i64: 1>, scalar_prefetch = 0 : i64, scratch_operands = 0 : i64, tpu.core_type = #tpu.core_type<tc>, window_params = [{transform_indices = @transform_0, window_bounds = array<i64: 16, 2>}, {transform_indices = @transform_1, window_bounds = array<i64: 16, 5>}, {pipeline_mode = #tpu.pipeline_mode<synchronous>, transform_indices = @transform_2, window_bounds = array<i64: 10, 32>}, {pipeline_mode = #tpu.pipeline_mode<synchronous>, transform_indices = @transform_3, window_bounds = array<i64: 7, 32>}, {pipeline_mode = #tpu.pipeline_mode<synchronous>, transform_indices = @transform_4, window_bounds = array<i64: 5, 32>}, {pipeline_mode = #tpu.pipeline_mode<synchronous>, transform_indices = @transform_5, window_bounds = array<i64: 1, 32>}, {pipeline_mode = #tpu.pipeline_mode<synchronous>, transform_indices = @transform_6, window_bounds = array<i64: 32, 16>}, {pipeline_mode = #tpu.pipeline_mode<synchronous>, transform_indices = @transform_7, window_bounds = array<i64: 1, 16>}, {pipeline_mode = #tpu.pipeline_mode<synchronous>, transform_indices = @transform_8, window_bounds = array<i64: 16, 2>}, {pipeline_mode = #tpu.pipeline_mode<synchronous>, transform_indices = @transform_9, window_bounds = array<i64: 1, 2>}, {transform_indices = @transform_10, window_bounds = array<i64: 16, 2>}]} {
    %c0 = arith.constant 0 : index
    %c0_0 = arith.constant 0 : index
    %0 = vector.load %arg1[%c0, %c0_0] : memref<16x2xi32, #tpu.memory_space<vmem>>, vector<16x2xi32>
    %c0_1 = arith.constant 0 : index
    %c0_2 = arith.constant 0 : index
    %1 = vector.load %arg2[%c0_1, %c0_2] : memref<16x5xbf16, #tpu.memory_space<vmem>>, vector<16x5xbf16>
    %c0_3 = arith.constant 0 : index
    %c0_4 = arith.constant 0 : index
    %2 = vector.load %arg5[%c0_3, %c0_4] : memref<5x32xbf16, #tpu.memory_space<vmem>>, vector<5x32xbf16>
    %cst = arith.constant dense<0.000000e+00> : vector<16x32xf32>
    %3 = tpu.matmul %1, %2, %cst {dimension_numbers = #tpu.dot_dimension_numbers<[1], [0], [0], [1], [0, 0, 1, 1], [], []>} : vector<16x5xbf16>, vector<5x32xbf16>, vector<16x32xf32> -> vector<16x32xf32>
    %4 = vector.extract_strided_slice %0 {offsets = [0, 0], sizes = [16, 1], strides = [1, 1]} : vector<16x2xi32> to vector<16x1xi32>
    %5 = tpu.iota {dimensions = array<i32: 1>} : vector<16x10xi32>
    %6 = vector.broadcast %4 : vector<16x1xi32> to vector<16x10xi32>
    %7 = arith.cmpi eq, %6, %5 : vector<16x10xi32>
    %8 = arith.extui %7 : vector<16x10xi1> to vector<16x10xi32>
    %9 = arith.sitofp %8 : vector<16x10xi32> to vector<16x10xf32>
    %10 = arith.truncf %9 : vector<16x10xf32> to vector<16x10xbf16>
    %c0_5 = arith.constant 0 : index
    %c0_6 = arith.constant 0 : index
    %11 = vector.load %arg3[%c0_5, %c0_6] : memref<10x32xbf16, #tpu.memory_space<vmem>>, vector<10x32xbf16>
    %cst_7 = arith.constant dense<0.000000e+00> : vector<16x32xf32>
    %12 = tpu.matmul %10, %11, %cst_7 {dimension_numbers = #tpu.dot_dimension_numbers<[1], [0], [0], [1], [0, 0, 1, 1], [], []>} : vector<16x10xbf16>, vector<10x32xbf16>, vector<16x32xf32> -> vector<16x32xf32>
    %13 = arith.addf %3, %12 : vector<16x32xf32>
    %14 = vector.extract_strided_slice %0 {offsets = [0, 1], sizes = [16, 1], strides = [1, 1]} : vector<16x2xi32> to vector<16x1xi32>
    %15 = tpu.iota {dimensions = array<i32: 1>} : vector<16x7xi32>
    %16 = vector.broadcast %14 : vector<16x1xi32> to vector<16x7xi32>
    %17 = arith.cmpi eq, %16, %15 : vector<16x7xi32>
    %18 = arith.extui %17 : vector<16x7xi1> to vector<16x7xi32>
    %19 = arith.sitofp %18 : vector<16x7xi32> to vector<16x7xf32>
    %20 = arith.truncf %19 : vector<16x7xf32> to vector<16x7xbf16>
    %c0_8 = arith.constant 0 : index
    %c0_9 = arith.constant 0 : index
    %21 = vector.load %arg4[%c0_8, %c0_9] : memref<7x32xbf16, #tpu.memory_space<vmem>>, vector<7x32xbf16>
    %cst_10 = arith.constant dense<0.000000e+00> : vector<16x32xf32>
    %22 = tpu.matmul %20, %21, %cst_10 {dimension_numbers = #tpu.dot_dimension_numbers<[1], [0], [0], [1], [0, 0, 1, 1], [], []>} : vector<16x7xbf16>, vector<7x32xbf16>, vector<16x32xf32> -> vector<16x32xf32>
    %23 = arith.addf %13, %22 : vector<16x32xf32>
    %c0_11 = arith.constant 0 : index
    %c0_12 = arith.constant 0 : index
    %24 = vector.load %arg6[%c0_11, %c0_12] : memref<1x32xf32, #tpu.memory_space<vmem>>, vector<1x32xf32>
    %25 = vector.broadcast %24 : vector<1x32xf32> to vector<16x32xf32>
    %26 = arith.addf %23, %25 : vector<16x32xf32>
    %27 = arith.truncf %26 : vector<16x32xf32> to vector<16x32xbf16>
    %cst_13 = arith.constant 5.000000e-01 : bf16
    %28 = vector.broadcast %cst_13 : bf16 to vector<16x32xbf16>
    %29 = arith.mulf %28, %27 : vector<16x32xbf16>
    %30 = math.tanh %29 : vector<16x32xbf16>
    %cst_14 = arith.constant 5.000000e-01 : bf16
    %31 = vector.broadcast %cst_14 : bf16 to vector<16x32xbf16>
    %32 = arith.mulf %31, %30 : vector<16x32xbf16>
    %cst_15 = arith.constant 5.000000e-01 : bf16
    %33 = vector.broadcast %cst_15 : bf16 to vector<16x32xbf16>
    %34 = arith.addf %32, %33 : vector<16x32xbf16>
    %c0_16 = arith.constant 0 : index
    %c0_17 = arith.constant 0 : index
    %35 = vector.load %arg7[%c0_16, %c0_17] : memref<32x16xbf16, #tpu.memory_space<vmem>>, vector<32x16xbf16>
    %c0_18 = arith.constant 0 : index
    %c0_19 = arith.constant 0 : index
    %36 = vector.load %arg8[%c0_18, %c0_19] : memref<1x16xf32, #tpu.memory_space<vmem>>, vector<1x16xf32>
    %cst_20 = arith.constant dense<0.000000e+00> : vector<16x16xf32>
    %37 = tpu.matmul %34, %35, %cst_20 {dimension_numbers = #tpu.dot_dimension_numbers<[1], [0], [0], [1], [0, 0, 1, 1], [], []>} : vector<16x32xbf16>, vector<32x16xbf16>, vector<16x16xf32> -> vector<16x16xf32>
    %38 = vector.broadcast %36 : vector<1x16xf32> to vector<16x16xf32>
    %39 = arith.addf %37, %38 : vector<16x16xf32>
    %40 = arith.truncf %39 : vector<16x16xf32> to vector<16x16xbf16>
    %cst_21 = arith.constant 5.000000e-01 : bf16
    %41 = vector.broadcast %cst_21 : bf16 to vector<16x16xbf16>
    %42 = arith.mulf %41, %40 : vector<16x16xbf16>
    %43 = math.tanh %42 : vector<16x16xbf16>
    %cst_22 = arith.constant 5.000000e-01 : bf16
    %44 = vector.broadcast %cst_22 : bf16 to vector<16x16xbf16>
    %45 = arith.mulf %44, %43 : vector<16x16xbf16>
    %cst_23 = arith.constant 5.000000e-01 : bf16
    %46 = vector.broadcast %cst_23 : bf16 to vector<16x16xbf16>
    %47 = arith.addf %45, %46 : vector<16x16xbf16>
    %c0_24 = arith.constant 0 : index
    %c0_25 = arith.constant 0 : index
    %48 = vector.load %arg9[%c0_24, %c0_25] : memref<16x2xbf16, #tpu.memory_space<vmem>>, vector<16x2xbf16>
    %c0_26 = arith.constant 0 : index
    %c0_27 = arith.constant 0 : index
    %49 = vector.load %arg10[%c0_26, %c0_27] : memref<1x2xf32, #tpu.memory_space<vmem>>, vector<1x2xf32>
    %cst_28 = arith.constant dense<0.000000e+00> : vector<16x2xf32>
    %50 = tpu.matmul %47, %48, %cst_28 {dimension_numbers = #tpu.dot_dimension_numbers<[1], [0], [0], [1], [0, 0, 1, 1], [], []>} : vector<16x16xbf16>, vector<16x2xbf16>, vector<16x2xf32> -> vector<16x2xf32>
    %51 = vector.broadcast %49 : vector<1x2xf32> to vector<16x2xf32>
    %52 = arith.addf %50, %51 : vector<16x2xf32>
    %cst_29 = arith.constant 5.000000e-01 : f32
    %53 = vector.broadcast %cst_29 : f32 to vector<16x2xf32>
    %54 = arith.mulf %53, %52 : vector<16x2xf32>
    %55 = math.tanh %54 : vector<16x2xf32>
    %cst_30 = arith.constant 5.000000e-01 : f32
    %56 = vector.broadcast %cst_30 : f32 to vector<16x2xf32>
    %57 = arith.mulf %56, %55 : vector<16x2xf32>
    %cst_31 = arith.constant 5.000000e-01 : f32
    %58 = vector.broadcast %cst_31 : f32 to vector<16x2xf32>
    %59 = arith.addf %57, %58 : vector<16x2xf32>
    %60 = arith.truncf %59 : vector<16x2xf32> to vector<16x2xbf16>
    %c0_32 = arith.constant 0 : index
    %c0_33 = arith.constant 0 : index
    %61 = vector.load %arg11[%c0_32, %c0_33] : memref<16x2xbf16, #tpu.memory_space<vmem>>, vector<16x2xbf16>
    tpu.vector_store %arg11[%c0_32, %c0_33], %60 {strides = array<i32>} : memref<16x2xbf16, #tpu.memory_space<vmem>>, vector<16x2xbf16>,
    return
  }
  func.func @transform_0(%arg0: i32) -> (i32, i32) {
    %c0_i32 = arith.constant 0 : i32
    %c0_i32_0 = arith.constant 0 : i32
    return %arg0, %c0_i32 : i32, i32
  }
  func.func @transform_1(%arg0: i32) -> (i32, i32) {
    %c0_i32 = arith.constant 0 : i32
    %c0_i32_0 = arith.constant 0 : i32
    return %arg0, %c0_i32 : i32, i32
  }
  func.func @transform_2(%arg0: i32) -> (i32, i32) {
    %c0_i32 = arith.constant 0 : i32
    %c0_i32_0 = arith.constant 0 : i32
    %c0_i32_1 = arith.constant 0 : i32
    return %c0_i32, %c0_i32_0 : i32, i32
  }
  func.func @transform_3(%arg0: i32) -> (i32, i32) {
    %c0_i32 = arith.constant 0 : i32
    %c0_i32_0 = arith.constant 0 : i32
    %c0_i32_1 = arith.constant 0 : i32
    return %c0_i32, %c0_i32_0 : i32, i32
  }
  func.func @transform_4(%arg0: i32) -> (i32, i32) {
    %c0_i32 = arith.constant 0 : i32
    %c0_i32_0 = arith.constant 0 : i32
    %c0_i32_1 = arith.constant 0 : i32
    return %c0_i32, %c0_i32_0 : i32, i32
  }
  func.func @transform_5(%arg0: i32) -> (i32, i32) {
    %c0_i32 = arith.constant 0 : i32
    %c0_i32_0 = arith.constant 0 : i32
    %c0_i32_1 = arith.constant 0 : i32
    return %c0_i32, %c0_i32_0 : i32, i32
  }
  func.func @transform_6(%arg0: i32) -> (i32, i32) {
    %c0_i32 = arith.constant 0 : i32
    %c0_i32_0 = arith.constant 0 : i32
    %c0_i32_1 = arith.constant 0 : i32
    return %c0_i32, %c0_i32_0 : i32, i32
  }
  func.func @transform_7(%arg0: i32) -> (i32, i32) {
    %c0_i32 = arith.constant 0 : i32
    %c0_i32_0 = arith.constant 0 : i32
    %c0_i32_1 = arith.constant 0 : i32
    return %c0_i32, %c0_i32_0 : i32, i32
  }
  func.func @transform_8(%arg0: i32) -> (i32, i32) {
    %c0_i32 = arith.constant 0 : i32
    %c0_i32_0 = arith.constant 0 : i32
    %c0_i32_1 = arith.constant 0 : i32
    return %c0_i32, %c0_i32_0 : i32, i32
  }
  func.func @transform_9(%arg0: i32) -> (i32, i32) {
    %c0_i32 = arith.constant 0 : i32
    %c0_i32_0 = arith.constant 0 : i32
    %c0_i32_1 = arith.constant 0 : i32
    return %c0_i32, %c0_i32_0 : i32, i32
  }
  func.func @transform_10(%arg0: i32) -> (i32, i32) {
    %c0_i32 = arith.constant 0 : i32
    %c0_i32_0 = arith.constant 0 : i32
    return %arg0, %c0_i32 : i32, i32
  }
}

</mosaic_0001>

<llo_original>
// kernel: tpu_custom_call.1
$region0: #{tpu_custom_call.1}
  #allocation0 [shape = 'u32[]', space=smem, size = 0x4, offset = 0x4, fixed_abs, tag = 'smem constant byte address 0x4 - core index']
  #allocation1 [shape = 'u32[144,128]{1,0:T(1,128)}', space=vmem, size = 0x12000, scoped, tag = 'internal scratch']
  %s0 = inlined_call_operand.vmem [shape: s32[16,2], index: 0, kind: input, shape index: {}]
  %s1 = inlined_call_operand.vmem [shape: bf16[16,5], index: 1, kind: input, shape index: {}]
  %s2 = inlined_call_operand.vmem [shape: bf16[10,32], index: 2, kind: input, shape index: {}]
  %s3 = inlined_call_operand.vmem [shape: bf16[7,32], index: 3, kind: input, shape index: {}]
  %s4 = inlined_call_operand.vmem [shape: bf16[5,32], index: 4, kind: input, shape index: {}]
  %s5 = inlined_call_operand.vmem [shape: f32[1,32], index: 5, kind: input, shape index: {}]
  %s6 = inlined_call_operand.vmem [shape: bf16[32,16], index: 6, kind: input, shape index: {}]
  %s7 = inlined_call_operand.vmem [shape: f32[1,16], index: 7, kind: input, shape index: {}]
  %s8 = inlined_call_operand.vmem [shape: bf16[16,2], index: 8, kind: input, shape index: {}]
  %s9 = inlined_call_operand.vmem [shape: f32[1,2], index: 9, kind: input, shape index: {}]
  %s10 = inlined_call_operand.vmem [shape: bf16[16,2], index: 10, kind: output, shape index: {}]
  %s11 = sld [smem:[#allocation0]]
  $region50: #{tpu_custom_call.1} parent=0
    _
  %s13 = ssub.s32 1, %s11
  %s14 = scalar_select 0, %s13, %s11
  // Predicated region
  $region2: #{tpu_custom_call.1} parent=0 // pred_check
    _
  $region3: #{tpu_custom_call.1} parent=0 // pred_check_branch
    %16 = sbr.rel (0) target = $region5
  $region4: #{tpu_custom_call.1} parent=0 // pred_region
    _
  $region5: #{tpu_custom_call.1} parent=0 // pred_fallthru
    _
  // Predicated region
  $region6: #{tpu_custom_call.1} parent=0 // pred_check
    _
  $region7: #{tpu_custom_call.1} parent=0 // pred_check_branch
    %18 = sbr.rel (0) target = $region9
  $region8: #{tpu_custom_call.1} parent=0 // pred_region
    _
  $region9: #{tpu_custom_call.1} parent=0 // pred_fallthru
    _
  // Predicated region
  $region10: #{tpu_custom_call.1} parent=0 // pred_check
    _
  $region11: #{tpu_custom_call.1} parent=0 // pred_check_branch
    %20 = sbr.rel (0) target = $region13
  $region12: #{tpu_custom_call.1} parent=0 // pred_region
    _
  $region13: #{tpu_custom_call.1} parent=0 // pred_fallthru
    _
  // Predicated region
  $region14: #{tpu_custom_call.1} parent=0 // pred_check
    _
  $region15: #{tpu_custom_call.1} parent=0 // pred_check_branch
    %22 = sbr.rel (0) target = $region17
  $region16: #{tpu_custom_call.1} parent=0 // pred_region
    _
  $region17: #{tpu_custom_call.1} parent=0 // pred_fallthru
    _
  // Predicated region
  $region18: #{tpu_custom_call.1} parent=0 // pred_check
    _
  $region19: #{tpu_custom_call.1} parent=0 // pred_check_branch
    %24 = sbr.rel (0) target = $region21
  $region20: #{tpu_custom_call.1} parent=0 // pred_region
    _
  $region21: #{tpu_custom_call.1} parent=0 // pred_fallthru
    _
  // Predicated region
  $region22: #{tpu_custom_call.1} parent=0 // pred_check
    _
  $region23: #{tpu_custom_call.1} parent=0 // pred_check_branch
    %26 = sbr.rel (0) target = $region25
  $region24: #{tpu_custom_call.1} parent=0 // pred_region
    _
  $region25: #{tpu_custom_call.1} parent=0 // pred_fallthru
    _
  // Predicated region
  $region26: #{tpu_custom_call.1} parent=0 // pred_check
    _
  $region27: #{tpu_custom_call.1} parent=0 // pred_check_branch
    %28 = sbr.rel (0) target = $region29
  $region28: #{tpu_custom_call.1} parent=0 // pred_region
    _
  $region29: #{tpu_custom_call.1} parent=0 // pred_fallthru
    _
  // Predicated region
  $region30: #{tpu_custom_call.1} parent=0 // pred_check
    _
  $region31: #{tpu_custom_call.1} parent=0 // pred_check_branch
    %30 = sbr.rel (0) target = $region33
  $region32: #{tpu_custom_call.1} parent=0 // pred_region
    _
  $region33: #{tpu_custom_call.1} parent=0 // pred_fallthru
    _
  // Predicated region
  $region34: #{tpu_custom_call.1} parent=0 // pred_check
    _
  $region35: #{tpu_custom_call.1} parent=0 // pred_check_branch
    %32 = sbr.rel (0) target = $region37
  $region36: #{tpu_custom_call.1} parent=0 // pred_region
    _
  $region37: #{tpu_custom_call.1} parent=0 // pred_fallthru
    _
  // Predicated region
  $region38: #{tpu_custom_call.1} parent=0 // pred_check
    _
  $region39: #{tpu_custom_call.1} parent=0 // pred_check_branch
    %34 = sbr.rel (0) target = $region41
  $region40: #{tpu_custom_call.1} parent=0 // pred_region
    _
  $region41: #{tpu_custom_call.1} parent=0 // pred_fallthru
    _
  %v37 = vld [vmem:[%s0] sm:$0xff]
  %v38 = vld [vmem:[%s0 + $0x8] sm:$0xff]
  %v39 = vld [vmem:[%s1] sm:$0xf]
  %v40 = vld [vmem:[%s1 + $0x4] sm:$0xf]
  %v41 = vld [vmem:[%s4] sm:$0x7]
  %v42 = vlaneseq
  %v43 = vand.u32 %v42, 127
  %44 = vset.pattern.permute.xlu0 0
  %45 = vperm.xlu0 %44, %v37
  %v46 = vpop.permute.xlu0 %45
  %47 = vset.pattern.permute.xlu0 0
  %48 = vperm.xlu0 %47, %v38
  %v49 = vpop.permute.xlu0 %48
  %vm50 = vcmp.eq.s32.totalorder %v46, %v43
  %vm51 = vcmp.eq.s32.totalorder %v49, %v43
  %v52 = vsel %vm50, 1, 0
  %v53 = vsel %vm51, 1, 0
  %v54 = vcvt.s32.f32 %v52
  %v55 = vcvt.s32.f32 %v53
  %v56 = vpack.c.bf16 %v55, %v54
  %v57 = vld [vmem:[%s2] sm:$0xf]
  %v58 = vld [vmem:[%s2 + $0x4] sm:$0x1]
  %v61 = vunpack.c.l.b16 %v57
  %v62 = vunpack.c.l.b16 %v58
  %v63 = vpack.c.b16 %v62, %v61
  %vm64 = vcmask 80896
  %v66 = vsel %vm64, %v56, 0
  %vm68 = vcmask 1044480
  %v70 = vsel %vm68, %v63, 0
  %72 = vmatprep.subr.bf16.mxu0 0
  %73 = vmatpush1.bf16.msra.mxu0 %v70
  %74 = vmatprep.subr.bf16.mxu0 0
  %75 = vmatpush1.bf16.msra.mxu0 0
  %76 = vmatprep.subr.bf16.mxu0 0
  %77 = vmatpush1.bf16.msra.mxu0 0
  %78 = vmatprep.subr.bf16.mxu0 0
  %79 = vmatpush1.bf16.msra.mxu0 0
  %80 = vmatprep.subr.bf16.mxu0 0
  %81 = vmatpush1.bf16.msra.mxu0 0
  %82 = vmatprep.subr.bf16.mxu0 0
  %83 = vmatpush1.bf16.msra.mxu0 0
  %84 = vmatprep.subr.bf16.mxu0 0
  %85 = vmatpush1.bf16.msra.mxu0 0
  %86 = vmatprep.subr.bf16.mxu0 0
  %87 = vmatpush1.bf16.msra.mxu0 0
  %88 = vmatprep.subr.bf16.mxu0 0
  %89 = vmatpush1.bf16.msra.mxu0 0
  %90 = vmatprep.subr.bf16.mxu0 0
  %91 = vmatpush1.bf16.msra.mxu0 0
  %92 = vmatprep.subr.bf16.mxu0 0
  %93 = vmatpush1.bf16.msra.mxu0 0
  %94 = vmatprep.subr.bf16.mxu0 0
  %95 = vmatpush1.bf16.msra.mxu0 0
  %96 = vmatprep.subr.bf16.mxu0 0
  %97 = vmatpush1.bf16.msra.mxu0 0
  %98 = vmatprep.subr.bf16.mxu0 0
  %99 = vmatpush1.bf16.msra.mxu0 0
  %100 = vmatprep.subr.bf16.mxu0 0
  %101 = vmatpush1.bf16.msra.mxu0 0
  %102 = vmatprep.subr.bf16.mxu0 0
  %103 = vmatpush1.bf16.msra.mxu0 0
  %104 = vmatprep.mubr.bf16.mxu0 0
  %105 = vmatmul.mubr.bf16.gmra.mrb[0].mxu0 %v66
  %v106 = vpop.f32.mrb[0].mxu0
  %v107 = vadd.f32 0.0, %v106
  %v108 = vpop.f32.mrb[0].mxu0
  %v109 = vpop.f32.mrb[0].mxu0
  %v110 = vadd.f32 0.0, %v109
  %v111 = vpop.f32.mrb[0].mxu0
  %112 = vdwg.mxu0
  %v115 = vunpack.c.l.b16 %v39
  %v116 = vunpack.c.l.b16 %v40
  %v117 = vpack.c.b16 %v116, %v115
  %vm118 = vcmask 39936
  %v120 = vsel %vm118, %v117, 0
  %vm122 = vcmask 1041408
  %vm123 = vcmask 1042432
  %v124 = vsel %vm122, 4294967295, 65535
  %v125 = vsel %vm123, %v124, 0
  %v127 = vand.u32 %v41, %v125
  %129 = vmatprep.subr.bf16.mxu0 0
  %130 = vmatpush1.bf16.msra.mxu0 %v127
  %131 = vmatprep.subr.bf16.mxu0 0
  %132 = vmatpush1.bf16.msra.mxu0 0
  %133 = vmatprep.subr.bf16.mxu0 0
  %134 = vmatpush1.bf16.msra.mxu0 0
  %135 = vmatprep.subr.bf16.mxu0 0
  %136 = vmatpush1.bf16.msra.mxu0 0
  %137 = vmatprep.subr.bf16.mxu0 0
  %138 = vmatpush1.bf16.msra.mxu0 0
  %139 = vmatprep.subr.bf16.mxu0 0
  %140 = vmatpush1.bf16.msra.mxu0 0
  %141 = vmatprep.subr.bf16.mxu0 0
  %142 = vmatpush1.bf16.msra.mxu0 0
  %143 = vmatprep.subr.bf16.mxu0 0
  %144 = vmatpush1.bf16.msra.mxu0 0
  %145 = vmatprep.subr.bf16.mxu0 0
  %146 = vmatpush1.bf16.msra.mxu0 0
  %147 = vmatprep.subr.bf16.mxu0 0
  %148 = vmatpush1.bf16.msra.mxu0 0
  %149 = vmatprep.subr.bf16.mxu0 0
  %150 = vmatpush1.bf16.msra.mxu0 0
  %151 = vmatprep.subr.bf16.mxu0 0
  %152 = vmatpush1.bf16.msra.mxu0 0
  %153 = vmatprep.subr.bf16.mxu0 0
  %154 = vmatpush1.bf16.msra.mxu0 0
  %155 = vmatprep.subr.bf16.mxu0 0
  %156 = vmatpush1.bf16.msra.mxu0 0
  %157 = vmatprep.subr.bf16.mxu0 0
  %158 = vmatpush1.bf16.msra.mxu0 0
  %159 = vmatprep.subr.bf16.mxu0 0
  %160 = vmatpush1.bf16.msra.mxu0 0
  %161 = vmatprep.mubr.bf16.mxu0 0
  %162 = vmatmul.mubr.bf16.gmra.mrb[0].mxu0 %v120
  %v163 = vpop.f32.mrb[0].mxu0
  %v164 = vadd.f32 %v107, %v163
  %v165 = vpop.f32.mrb[0].mxu0
  %v166 = vpop.f32.mrb[0].mxu0
  %v167 = vadd.f32 %v110, %v166
  %v168 = vpop.f32.mrb[0].mxu0
  %169 = vdwg.mxu0
  %170 = vset.pattern.permute.xlu0 1
  %171 = vperm.xlu0 %170, %v37
  %v172 = vpop.permute.xlu0 %171
  %173 = vset.pattern.permute.xlu0 1
  %174 = vperm.xlu0 %173, %v38
  %v175 = vpop.permute.xlu0 %174
  %vm176 = vcmp.eq.s32.totalorder %v172, %v43
  %vm177 = vcmp.eq.s32.totalorder %v175, %v43
  %v178 = vsel %vm176, 1, 0
  %v179 = vsel %vm177, 1, 0
  %v180 = vcvt.s32.f32 %v178
  %v181 = vcvt.s32.f32 %v179
  %v182 = vpack.c.bf16 %v181, %v180
  %v183 = vld [vmem:[%s3] sm:$0xf]
  %vm184 = vcmask 56320
  %v186 = vsel %vm184, %v182, 0
  %vm188 = vcmask 1043456
  %v189 = vsel %vm123, 4294967295, 65535
  %v190 = vsel %vm188, %v189, 0
  %v192 = vand.u32 %v183, %v190
  %194 = vmatprep.subr.bf16.mxu0 0
  %195 = vmatpush1.bf16.msra.mxu0 %v192
  %196 = vmatprep.subr.bf16.mxu0 0
  %197 = vmatpush1.bf16.msra.mxu0 0
  %198 = vmatprep.subr.bf16.mxu0 0
  %199 = vmatpush1.bf16.msra.mxu0 0
  %200 = vmatprep.subr.bf16.mxu0 0
  %201 = vmatpush1.bf16.msra.mxu0 0
  %202 = vmatprep.subr.bf16.mxu0 0
  %203 = vmatpush1.bf16.msra.mxu0 0
  %204 = vmatprep.subr.bf16.mxu0 0
  %205 = vmatpush1.bf16.msra.mxu0 0
  %206 = vmatprep.subr.bf16.mxu0 0
  %207 = vmatpush1.bf16.msra.mxu0 0
  %208 = vmatprep.subr.bf16.mxu0 0
  %209 = vmatpush1.bf16.msra.mxu0 0
  %210 = vmatprep.subr.bf16.mxu0 0
  %211 = vmatpush1.bf16.msra.mxu0 0
  %212 = vmatprep.subr.bf16.mxu0 0
  %213 = vmatpush1.bf16.msra.mxu0 0
  %214 = vmatprep.subr.bf16.mxu0 0
  %215 = vmatpush1.bf16.msra.mxu0 0
  %216 = vmatprep.subr.bf16.mxu0 0
  %217 = vmatpush1.bf16.msra.mxu0 0
  %218 = vmatprep.subr.bf16.mxu0 0
  %219 = vmatpush1.bf16.msra.mxu0 0
  %220 = vmatprep.subr.bf16.mxu0 0
  %221 = vmatpush1.bf16.msra.mxu0 0
  %222 = vmatprep.subr.bf16.mxu0 0
  %223 = vmatpush1.bf16.msra.mxu0 0
  %224 = vmatprep.subr.bf16.mxu0 0
  %225 = vmatpush1.bf16.msra.mxu0 0
  %226 = vmatprep.mubr.bf16.mxu0 0
  %227 = vmatmul.mubr.bf16.gmra.mrb[0].mxu0 %v186
  %v228 = vpop.f32.mrb[0].mxu0
  %v229 = vadd.f32 0.0, %v228
  %v230 = vpop.f32.mrb[0].mxu0
  %v231 = vpop.f32.mrb[0].mxu0
  %v232 = vadd.f32 0.0, %v231
  %v233 = vpop.f32.mrb[0].mxu0
  %234 = vdwg.mxu0
  %v235 = vadd.f32 %v164, %v229
  %v236 = vadd.f32 %v167, %v232
  %v237 = vld [vmem:[%s5] sm:$0x1]
  %v239 = vlaneseq
  %v240 = vshrl.u32 %v239, 7
  %v241 = vsub.s32 0, %v240
  %v242 = vrot.slane %v237, %v241
  %v244 = vadd.f32 %v235, %v242
  %v245 = vadd.f32 %v236, %v242
  %v246 = vpack.c.bf16 %v245, %v244
  %v247 = vmul.bf16 %v246, 1056980736
  %v248 = vtanh.bf16.pop %v247
  %v249 = vmul.bf16 %v248, 1056980736
  %v250 = vadd.bf16 %v249, 1056980736
  %v251 = vld [vmem:[%s6] sm:$0xf]
  %v252 = vld [vmem:[%s6 + $0x4] sm:$0xf]
  %v253 = vld [vmem:[%s6 + $0x8] sm:$0xf]
  %v254 = vld [vmem:[%s6 + $0xc] sm:$0xf]
  %v255 = vld [vmem:[%s7] sm:$0x1]
  %v257 = vlaneseq
  %v258 = vshrl.u32 %v257, 7
  %v259 = vsub.s32 0, %v258
  %v260 = vrot.slane %v255, %v259
  %v266 = vunpack.c.l.b16 %v251
  %v267 = vunpack.c.l.b16 %v252
  %v268 = vunpack.c.l.b16 %v253
  %v269 = vunpack.c.l.b16 %v254
  %v270 = vpack.c.b16 %v267, %v266
  %v271 = vpack.c.b16 %v269, %v268
  %vm274 = vcmask 261120
  %v276 = vsel %vm274, %v250, 0
  %278 = vmatprep.subr.bf16.mxu0 0
  %279 = vmatpush1.bf16.msra.mxu0 %v270
  %280 = vmatprep.subr.bf16.mxu0 0
  %281 = vmatpush1.bf16.msra.mxu0 %v271
  %282 = vmatprep.subr.bf16.mxu0 0
  %283 = vmatpush1.bf16.msra.mxu0 0
  %284 = vmatprep.subr.bf16.mxu0 0
  %285 = vmatpush1.bf16.msra.mxu0 0
  %286 = vmatprep.subr.bf16.mxu0 0
  %287 = vmatpush1.bf16.msra.mxu0 0
  %288 = vmatprep.subr.bf16.mxu0 0
  %289 = vmatpush1.bf16.msra.mxu0 0
  %290 = vmatprep.subr.bf16.mxu0 0
  %291 = vmatpush1.bf16.msra.mxu0 0
  %292 = vmatprep.subr.bf16.mxu0 0
  %293 = vmatpush1.bf16.msra.mxu0 0
  %294 = vmatprep.subr.bf16.mxu0 0
  %295 = vmatpush1.bf16.msra.mxu0 0
  %296 = vmatprep.subr.bf16.mxu0 0
  %297 = vmatpush1.bf16.msra.mxu0 0
  %298 = vmatprep.subr.bf16.mxu0 0
  %299 = vmatpush1.bf16.msra.mxu0 0
  %300 = vmatprep.subr.bf16.mxu0 0
  %301 = vmatpush1.bf16.msra.mxu0 0
  %302 = vmatprep.subr.bf16.mxu0 0
  %303 = vmatpush1.bf16.msra.mxu0 0
  %304 = vmatprep.subr.bf16.mxu0 0
  %305 = vmatpush1.bf16.msra.mxu0 0
  %306 = vmatprep.subr.bf16.mxu0 0
  %307 = vmatpush1.bf16.msra.mxu0 0
  %308 = vmatprep.subr.bf16.mxu0 0
  %309 = vmatpush1.bf16.msra.mxu0 0
  %310 = vmatprep.mubr.bf16.mxu0 0
  %311 = vmatmul.mubr.bf16.gmra.mrb[0].mxu0 %v276
  %v312 = vpop.f32.mrb[0].mxu0
  %v313 = vadd.f32 %v260, %v312
  %v314 = vpop.f32.mrb[0].mxu0
  %v315 = vpop.f32.mrb[0].mxu0
  %v316 = vadd.f32 %v260, %v315
  %v317 = vpop.f32.mrb[0].mxu0
  %318 = vdwg.mxu0
  %v319 = vpack.c.bf16 %v316, %v313
  %v320 = vmul.bf16 %v319, 1056980736
  %v321 = vtanh.bf16.pop %v320
  %v322 = vmul.bf16 %v321, 1056980736
  %v323 = vadd.bf16 %v322, 1056980736
  %v324 = vld [vmem:[%s8] sm:$0xf]
  %v325 = vld [vmem:[%s8 + $0x4] sm:$0xf]
  %v326 = vld [vmem:[%s9] sm:$0x1]
  %v328 = vlaneseq
  %v329 = vshrl.u32 %v328, 7
  %v330 = vsub.s32 0, %v329
  %v331 = vrot.slane %v326, %v330
  %v335 = vunpack.c.l.b16 %v324
  %v336 = vunpack.c.l.b16 %v325
  %v337 = vpack.c.b16 %v336, %v335
  %vm339 = vcmask 130048
  %v341 = vsel %vm339, %v323, 0
  %343 = vmatprep.subr.bf16.mxu0 0
  %344 = vmatpush1.bf16.msra.mxu0 %v337
  %345 = vmatprep.subr.bf16.mxu0 0
  %346 = vmatpush1.bf16.msra.mxu0 0
  %347 = vmatprep.subr.bf16.mxu0 0
  %348 = vmatpush1.bf16.msra.mxu0 0
  %349 = vmatprep.subr.bf16.mxu0 0
  %350 = vmatpush1.bf16.msra.mxu0 0
  %351 = vmatprep.subr.bf16.mxu0 0
  %352 = vmatpush1.bf16.msra.mxu0 0
  %353 = vmatprep.subr.bf16.mxu0 0
  %354 = vmatpush1.bf16.msra.mxu0 0
  %355 = vmatprep.subr.bf16.mxu0 0
  %356 = vmatpush1.bf16.msra.mxu0 0
  %357 = vmatprep.subr.bf16.mxu0 0
  %358 = vmatpush1.bf16.msra.mxu0 0
  %359 = vmatprep.subr.bf16.mxu0 0
  %360 = vmatpush1.bf16.msra.mxu0 0
  %361 = vmatprep.subr.bf16.mxu0 0
  %362 = vmatpush1.bf16.msra.mxu0 0
  %363 = vmatprep.subr.bf16.mxu0 0
  %364 = vmatpush1.bf16.msra.mxu0 0
  %365 = vmatprep.subr.bf16.mxu0 0
  %366 = vmatpush1.bf16.msra.mxu0 0
  %367 = vmatprep.subr.bf16.mxu0 0
  %368 = vmatpush1.bf16.msra.mxu0 0
  %369 = vmatprep.subr.bf16.mxu0 0
  %370 = vmatpush1.bf16.msra.mxu0 0
  %371 = vmatprep.subr.bf16.mxu0 0
  %372 = vmatpush1.bf16.msra.mxu0 0
  %373 = vmatprep.subr.bf16.mxu0 0
  %374 = vmatpush1.bf16.msra.mxu0 0
  %375 = vmatprep.mubr.bf16.mxu0 0
  %376 = vmatmul.mubr.bf16.gmra.mrb[0].mxu0 %v341
  %v377 = vpop.f32.mrb[0].mxu0
  %v378 = vadd.f32 %v331, %v377
  %v379 = vpop.f32.mrb[0].mxu0
  %v380 = vpop.f32.mrb[0].mxu0
  %v381 = vadd.f32 %v331, %v380
  %v382 = vpop.f32.mrb[0].mxu0
  %383 = vdwg.mxu0
  %v384 = vmul.f32 %v378, 0.5
  %v385 = vmul.f32 %v381, 0.5
  %v386 = vtanh.pop %v384
  %v387 = vtanh.pop %v385
  %v388 = vmul.f32 %v386, 0.5
  %v389 = vmul.f32 %v387, 0.5
  %v390 = vadd.f32 %v388, 0.5
  %v391 = vadd.f32 %v389, 0.5
  %v392 = vpack.c.bf16 %v391, %v390
  %v394 = vunpack.c.l.b16 %v392
  %v395 = vunpack.c.h.b16 %v392
  %v396 = vpack.c.b16 %v394, %v394
  %v397 = vpack.c.b16 %v395, %v395
  %vm400 = vcmask 11264
  %401 = vst.msk [vmem:[%s10] sm:$0xf] %vm400, %v396
  %402 = vst.msk [vmem:[%s10 + $0x4] sm:$0xf] %vm400, %v397
  // Predicated region
  $region42: #{tpu_custom_call.1} parent=0 // pred_check
    _
  $region43: #{tpu_custom_call.1} parent=0 // pred_check_branch
    %404 = sbr.rel (0) target = $region45
  $region44: #{tpu_custom_call.1} parent=0 // pred_region
    _
  $region45: #{tpu_custom_call.1} parent=0 // pred_fallthru
    _
  // Predicated region
  $region46: #{tpu_custom_call.1} parent=0 // pred_check
    _
  $region47: #{tpu_custom_call.1} parent=0 // pred_check_branch
    %406 = sbr.rel (0) target = $region49
  $region48: #{tpu_custom_call.1} parent=0 // pred_region
    _
  $region49: #{tpu_custom_call.1} parent=0 // pred_fallthru
    _

</llo_original>
